<compile_context>
chip_gen: v5e
topology: v5e:2x2
jax: 0.10.0
libtpu: 0.0.40
codegen_flags: <defaults>
</compile_context>

<pallas_src>
import functools

import jax
import jax.numpy as jnp
from jax import lax
from jax.experimental import pallas as pl
from jax.experimental.pallas import tpu as pltpu


# ----------------------------------------------------------------------------
# Fused Pallas kernel.
# ----------------------------------------------------------------------------
def _ln_channels(h, gamma, beta, eps):
    """LayerNorm over the channel (sublane) axis, per time step. f32 stats."""
    mean = jnp.mean(h, axis=0, keepdims=True)
    centered = h - mean
    var = jnp.mean(centered * centered, axis=0, keepdims=True)
    return centered * lax.rsqrt(var + eps) * gamma + beta


def _duration_predictor_kernel(x_ref, xh_ref, m_ref, mh_ref, pp_ref,
                               w1_ref, w2_ref, o_ref,
                               *, K, t_tile, eps, compute_dtype):
    # x_ref : (1, Cin, t_tile)  core block        xh_ref: (1, Cin, 128) halo
    # m_ref : (1, 1,   t_tile)  core mask block   mh_ref: (1, 1,   128) halo
    # pp_ref: (Fc, 8)  packed per-channel params [b1,g1,be1,b2,g2,be2,wp,bp]
    # w1_ref: (Fc, K*Cin) bf16   w2_ref: (Fc, K*Fc) bf16
    # o_ref : (1, 1, t_tile) f32
    half = K // 2
    halo = K - 1
    T_mid = t_tile + halo          # conv1 output width needed by conv2
    T_out = t_tile

    # Rebuild the halo'd window from the two lane-aligned blocks (VMEM-only).
    x_w = jnp.concatenate([x_ref[0], xh_ref[0]], axis=-1)   # (Cin, t_tile+128)
    m_w = jnp.concatenate([m_ref[0], mh_ref[0]], axis=-1)   # (1,   t_tile+128)

    pp = pp_ref[...]
    b1, g1, be1 = pp[:, 0:1], pp[:, 1:2], pp[:, 2:3]
    b2, g2, be2 = pp[:, 3:4], pp[:, 4:5], pp[:, 5:6]
    wp = pp[:, 6:7]
    bp = pp[0:1, 7:8]

    # ---- conv1: im2col on sublanes -> single MXU contraction (bf16 in, f32 acc)
    xm = (x_w * m_w).astype(compute_dtype)
    x1 = jnp.concatenate([xm[:, k:k + T_mid] for k in range(K)], axis=0)
    h = jnp.dot(w1_ref[...], x1, preferred_element_type=jnp.float32)
    h = jnp.maximum(h + b1, 0.0)                              # bias + relu
    h = _ln_channels(h, g1, be1, eps)                         # norm_1 (f32)
    h = (h * m_w[:, half:half + T_mid]).astype(compute_dtype)  # * x_mask

    # ---- conv2: same pattern ------------------------------------------------
    x2 = jnp.concatenate([h[:, k:k + T_out] for k in range(K)], axis=0)
    h2 = jnp.dot(w2_ref[...], x2, preferred_element_type=jnp.float32)
    h2 = jnp.maximum(h2 + b2, 0.0)
    h2 = _ln_channels(h2, g2, be2, eps)                       # norm_2 (f32)

    # ---- proj (Cout=1, k=1): VPU multiply + cross-channel reduce.
    # Pre-proj mask multiply dropped: mask is binary and proj is linear, so a
    # single mask after the bias add is exactly equivalent to the reference.
    m_out = m_w[:, halo:halo + T_out]
    out = jnp.sum(wp * h2, axis=0, keepdims=True) + bp        # (1, T_out)
    o_ref[0] = (out * m_out).astype(o_ref.dtype)              # return x*x_mask


# ----------------------------------------------------------------------------
# Wrapper: padding, weight/param re-layout, pallas_call.
# ----------------------------------------------------------------------------
def duration_predictor_forward(params, x, x_mask, *, t_tile=512, eps=1e-5,
                               compute_dtype=jnp.bfloat16):
    """x: [B, in_channels, T], x_mask (binary): [B, 1, T] -> [B, 1, T].

    t_tile must be a multiple of 128; 512-1024 recommended for real sequence
    lengths.  At t_tile <= 1024 the working set fits the default 32 MiB scoped
    VMEM on v5e/v6e/v7x; for larger tiles set vmem_limit_bytes explicitly.
    compute_dtype is used only for the two MXU contractions (f32 accumulation,
    LayerNorm statistics always f32).
    """
    B, Cin, T = x.shape
    Fc, _, K = params["conv1_w"].shape
    assert K % 2 == 1, "kernel_size must be odd (padding = k//2)"
    assert t_tile % 128 == 0, "t_tile must be a multiple of 128"
    halo = K - 1
    assert 2 * halo <= 128, "kernel_size too large for the 128-lane halo block"

    n_t = int(pl.cdiv(T, t_tile))
    tpb = t_tile // 128                       # 128-lane blocks per core tile
    T_pad = n_t * t_tile + 128                # core tiles + one trailing halo block

    xf = x.astype(jnp.float32)
    mf = x_mask.astype(jnp.float32)
    xp = jnp.pad(xf, ((0, 0), (0, 0), (halo, T_pad - halo - T)))
    mp = jnp.pad(mf, ((0, 0), (0, 0), (halo, T_pad - halo - T)))

    # Pre-flattened conv weights (Cout, K*Cin), k-major to match the in-kernel
    # sublane stacking; cast to the MXU compute dtype once in the wrapper.
    w1 = params["conv1_w"].transpose(0, 2, 1).reshape(Fc, K * Cin).astype(compute_dtype)
    w2 = params["conv2_w"].transpose(0, 2, 1).reshape(Fc, K * Fc).astype(compute_dtype)

    # Pack the eight small per-channel parameters into a single (Fc, 8) block.
    def col(v):
        return v.reshape(-1, 1).astype(jnp.float32)
    pack = jnp.concatenate([
        col(params["conv1_b"]), col(params["norm1_gamma"]), col(params["norm1_beta"]),
        col(params["conv2_b"]), col(params["norm2_gamma"]), col(params["norm2_beta"]),
        params["proj_w"].reshape(Fc, 1).astype(jnp.float32),
        jnp.broadcast_to(params["proj_b"].reshape(1, 1).astype(jnp.float32), (Fc, 1)),
    ], axis=1)                                                     # (Fc, 8)

    kernel = functools.partial(_duration_predictor_kernel, K=K, t_tile=t_tile,
                               eps=eps, compute_dtype=compute_dtype)

    def rep(shape):                            # resident parameter block
        return pl.BlockSpec(shape, lambda b, t: (0, 0))

    out = pl.pallas_call(
        kernel,
        out_shape=jax.ShapeDtypeStruct((B, 1, n_t * t_tile), jnp.float32),
        grid=(B, n_t),
        in_specs=[
            # core block and the next 128-lane halo block of the SAME array
            # (no duplicated staging in HBM; both blocks lane-aligned).
            pl.BlockSpec((1, Cin, t_tile), lambda b, t: (b, 0, t)),
            pl.BlockSpec((1, Cin, 128),    lambda b, t: (b, 0, (t + 1) * tpb)),
            pl.BlockSpec((1, 1, t_tile),   lambda b, t: (b, 0, t)),
            pl.BlockSpec((1, 1, 128),      lambda b, t: (b, 0, (t + 1) * tpb)),
            rep((Fc, 8)),
            rep((Fc, K * Cin)),
            rep((Fc, K * Fc)),
        ],
        # Output written directly in its final [B, 1, T_pad] layout.
        out_specs=pl.BlockSpec((1, 1, t_tile), lambda b, t: (b, 0, t)),
        compiler_params=pltpu.CompilerParams(
            dimension_semantics=("parallel", "parallel")),
    )(xp, xp, mp, mp, pack, w1, w2)

    return out[:, :, :T]


# ----------------------------------------------------------------------------
# Parameter init (deterministic).  weight_norm is identity at init.
# ----------------------------------------------------------------------------
def init_duration_predictor_params(key, in_channels, filter_channels,
                                   kernel_size, p_dropout=0.5, gin_channels=0):
    # TODO(synk): gin_channels=0, so the optional conditioning branch
    # (x = x + cond(g)) is omitted.
    # TODO(synk): Dropout(p_dropout) is identity in eval mode; training-time
    # dropout is not implemented.
    del p_dropout, gin_channels
    ks = jax.random.split(key, 10)

    def nrm(k, shape, scale):
        return jax.random.normal(k, shape, jnp.float32) * scale

    return {
        "conv1_w": nrm(ks[0], (filter_channels, in_channels, kernel_size), 0.3),
        "conv1_b": nrm(ks[1], (filter_channels,), 0.1),
        "norm1_gamma": 1.0 + nrm(ks[2], (filter_channels,), 0.1),
        "norm1_beta": nrm(ks[3], (filter_channels,), 0.1),
        "conv2_w": nrm(ks[4], (filter_channels, filter_channels, kernel_size), 0.1),
        "conv2_b": nrm(ks[5], (filter_channels,), 0.1),
        "norm2_gamma": 1.0 + nrm(ks[6], (filter_channels,), 0.1),
        "norm2_beta": nrm(ks[7], (filter_channels,), 0.1),
        "proj_w": nrm(ks[8], (1, filter_channels, 1), 0.1),
        "proj_b": nrm(ks[9], (1,), 0.1),
    }


# ----------------------------------------------------------------------------
# Pure-JAX reference (correctness check only).
# ----------------------------------------------------------------------------
def _ref_conv1d(x, w, b, pad):
    out = lax.conv_general_dilated(
        x, w, window_strides=(1,), padding=[(pad, pad)],
        dimension_numbers=("NCH", "OIH", "NCH"))
    return out + b[None, :, None]


def _ref_layer_norm(x, gamma, beta, eps=1e-5):
    mean = x.mean(axis=1, keepdims=True)
    var = ((x - mean) ** 2).mean(axis=1, keepdims=True)
    return ((x - mean) * lax.rsqrt(var + eps)
            * gamma[None, :, None] + beta[None, :, None])


def duration_predictor_ref(params, x, x_mask):
    K = params["conv1_w"].shape[-1]
    h = _ref_conv1d(x * x_mask, params["conv1_w"], params["conv1_b"], K // 2)
    h = jnp.maximum(h, 0.0)
    h = _ref_layer_norm(h, params["norm1_gamma"], params["norm1_beta"])
    h = _ref_conv1d(h * x_mask, params["conv2_w"], params["conv2_b"], K // 2)
    h = jnp.maximum(h, 0.0)
    h = _ref_layer_norm(h, params["norm2_gamma"], params["norm2_beta"])
    out = _ref_conv1d(h * x_mask, params["proj_w"], params["proj_b"], 0)
    return out * x_mask


if __name__ == "__main__":
    key = jax.random.PRNGKey(0)
    pkey, xkey = jax.random.split(key)

    B, in_channels, filter_channels, kernel_size, T = 2, 4, 32, 3, 16
    params = init_duration_predictor_params(
        pkey, in_channels, filter_channels, kernel_size, p_dropout=0.5)

    x = jax.random.normal(xkey, (B, in_channels, T), jnp.float32)
    lengths = jnp.array([T, 11])
    x_mask = (jnp.arange(T)[None, None, :]
              < lengths[:, None, None]).astype(jnp.float32)

    ref = jax.block_until_ready(duration_predictor_ref(params, x, x_mask))

    # Strict check with f32 MXU operands.
    out_f32 = jax.block_until_ready(duration_predictor_forward(
        params, x, x_mask, t_tile=128, compute_dtype=jnp.float32))
    assert out_f32.shape == (B, 1, T), out_f32.shape
    err_f32 = float(jnp.max(jnp.abs(out_f32 - ref)))
    assert jnp.allclose(out_f32, ref, rtol=2e-3, atol=2e-3), err_f32

    # Production path: bf16 MXU operands (f32 accumulation / LN statistics).
    out_bf16 = jax.block_until_ready(duration_predictor_forward(
        params, x, x_mask, t_tile=128, compute_dtype=jnp.bfloat16))
    assert out_bf16.shape == (B, 1, T), out_bf16.shape
    err_bf16 = float(jnp.max(jnp.abs(out_bf16 - ref)))
    assert jnp.allclose(out_bf16, ref, rtol=1e-1, atol=1e-1), err_bf16

    print("KERNEL_OK")
</pallas_src>

<mosaic_0001>
module attributes {stable_mosaic.version = 11 : i64} {
  func.func @_duration_predictor_kernel(%arg0: i32, %arg1: i32, %arg2: memref<1x4x128xf32, #tpu.memory_space<vmem>>, %arg3: memref<1x4x128xf32, #tpu.memory_space<vmem>>, %arg4: memref<1x1x128xf32, #tpu.memory_space<vmem>>, %arg5: memref<1x1x128xf32, #tpu.memory_space<vmem>>, %arg6: memref<32x8xf32, #tpu.memory_space<vmem>>, %arg7: memref<32x12xf32, #tpu.memory_space<vmem>>, %arg8: memref<32x96xf32, #tpu.memory_space<vmem>>, %arg9: memref<1x1x128xf32, #tpu.memory_space<vmem>>) attributes {dimension_semantics = [#tpu.dimension_semantics<parallel>, #tpu.dimension_semantics<parallel>], iteration_bounds = array<i64: 2, 1>, scalar_prefetch = 0 : i64, scratch_operands = 0 : i64, tpu.core_type = #tpu.core_type<tc>, window_params = [{transform_indices = @transform_0, window_bounds = array<i64: 1, 4, 128>}, {transform_indices = @transform_1, window_bounds = array<i64: 1, 4, 128>}, {transform_indices = @transform_2, window_bounds = array<i64: 1, 1, 128>}, {transform_indices = @transform_3, window_bounds = array<i64: 1, 1, 128>}, {pipeline_mode = #tpu.pipeline_mode<synchronous>, transform_indices = @transform_4, window_bounds = array<i64: 32, 8>}, {pipeline_mode = #tpu.pipeline_mode<synchronous>, transform_indices = @transform_5, window_bounds = array<i64: 32, 12>}, {pipeline_mode = #tpu.pipeline_mode<synchronous>, transform_indices = @transform_6, window_bounds = array<i64: 32, 96>}, {transform_indices = @transform_7, window_bounds = array<i64: 1, 1, 128>}]} {
    %c0 = arith.constant 0 : index
    %c0_0 = arith.constant 0 : index
    %c0_1 = arith.constant 0 : index
    %0 = vector.load %arg2[%c0, %c0_0, %c0_1] : memref<1x4x128xf32, #tpu.memory_space<vmem>>, vector<1x4x128xf32>
    %1 = vector.shape_cast %0 : vector<1x4x128xf32> to vector<4x128xf32>
    %c0_2 = arith.constant 0 : index
    %c0_3 = arith.constant 0 : index
    %c0_4 = arith.constant 0 : index
    %2 = vector.load %arg3[%c0_2, %c0_3, %c0_4] : memref<1x4x128xf32, #tpu.memory_space<vmem>>, vector<1x4x128xf32>
    %3 = vector.shape_cast %2 : vector<1x4x128xf32> to vector<4x128xf32>
    %4 = tpu.concatenate %1, %3 in 1 : vector<4x128xf32>, vector<4x128xf32> -> vector<4x256xf32>
    %c0_5 = arith.constant 0 : index
    %c0_6 = arith.constant 0 : index
    %c0_7 = arith.constant 0 : index
    %5 = vector.load %arg4[%c0_5, %c0_6, %c0_7] : memref<1x1x128xf32, #tpu.memory_space<vmem>>, vector<1x1x128xf32>
    %6 = vector.shape_cast %5 : vector<1x1x128xf32> to vector<1x128xf32>
    %c0_8 = arith.constant 0 : index
    %c0_9 = arith.constant 0 : index
    %c0_10 = arith.constant 0 : index
    %7 = vector.load %arg5[%c0_8, %c0_9, %c0_10] : memref<1x1x128xf32, #tpu.memory_space<vmem>>, vector<1x1x128xf32>
    %8 = vector.shape_cast %7 : vector<1x1x128xf32> to vector<1x128xf32>
    %9 = tpu.concatenate %6, %8 in 1 : vector<1x128xf32>, vector<1x128xf32> -> vector<1x256xf32>
    %c0_11 = arith.constant 0 : index
    %c0_12 = arith.constant 0 : index
    %10 = vector.load %arg6[%c0_11, %c0_12] : memref<32x8xf32, #tpu.memory_space<vmem>>, vector<32x8xf32>
    %11 = vector.extract_strided_slice %10 {offsets = [0, 0], sizes = [32, 1], strides = [1, 1]} : vector<32x8xf32> to vector<32x1xf32>
    %12 = vector.extract_strided_slice %10 {offsets = [0, 1], sizes = [32, 1], strides = [1, 1]} : vector<32x8xf32> to vector<32x1xf32>
    %13 = vector.extract_strided_slice %10 {offsets = [0, 2], sizes = [32, 1], strides = [1, 1]} : vector<32x8xf32> to vector<32x1xf32>
    %14 = vector.extract_strided_slice %10 {offsets = [0, 3], sizes = [32, 1], strides = [1, 1]} : vector<32x8xf32> to vector<32x1xf32>
    %15 = vector.extract_strided_slice %10 {offsets = [0, 4], sizes = [32, 1], strides = [1, 1]} : vector<32x8xf32> to vector<32x1xf32>
    %16 = vector.extract_strided_slice %10 {offsets = [0, 5], sizes = [32, 1], strides = [1, 1]} : vector<32x8xf32> to vector<32x1xf32>
    %17 = vector.extract_strided_slice %10 {offsets = [0, 6], sizes = [32, 1], strides = [1, 1]} : vector<32x8xf32> to vector<32x1xf32>
    %18 = vector.extract_strided_slice %10 {offsets = [0, 7], sizes = [1, 1], strides = [1, 1]} : vector<32x8xf32> to vector<1x1xf32>
    %19 = vector.broadcast %9 : vector<1x256xf32> to vector<4x256xf32>
    %20 = arith.mulf %4, %19 : vector<4x256xf32>
    %21 = vector.extract_strided_slice %20 {offsets = [0, 0], sizes = [4, 130], strides = [1, 1]} : vector<4x256xf32> to vector<4x130xf32>
    %22 = vector.extract_strided_slice %20 {offsets = [0, 1], sizes = [4, 130], strides = [1, 1]} : vector<4x256xf32> to vector<4x130xf32>
    %23 = vector.extract_strided_slice %20 {offsets = [0, 2], sizes = [4, 130], strides = [1, 1]} : vector<4x256xf32> to vector<4x130xf32>
    %24 = tpu.concatenate %21, %22, %23 in 0 : vector<4x130xf32>, vector<4x130xf32>, vector<4x130xf32> -> vector<12x130xf32>
    %c0_13 = arith.constant 0 : index
    %c0_14 = arith.constant 0 : index
    %25 = vector.load %arg7[%c0_13, %c0_14] : memref<32x12xf32, #tpu.memory_space<vmem>>, vector<32x12xf32>
    %cst = arith.constant dense<0.000000e+00> : vector<32x130xf32>
    %26 = tpu.matmul %25, %24, %cst {dimension_numbers = #tpu.dot_dimension_numbers<[1], [0], [0], [1], [0, 0, 1, 1], [], []>} : vector<32x12xf32>, vector<12x130xf32>, vector<32x130xf32> -> vector<32x130xf32>
    %27 = vector.broadcast %11 : vector<32x1xf32> to vector<32x130xf32>
    %28 = arith.addf %26, %27 : vector<32x130xf32>
    %cst_15 = arith.constant 0.000000e+00 : f32
    %29 = vector.broadcast %cst_15 : f32 to vector<32x130xf32>
    %30 = arith.maximumf %28, %29 : vector<32x130xf32>
    %cst_16 = arith.constant dense<0.000000e+00> : vector<130xf32>
    %31 = vector.multi_reduction <add>, %30, %cst_16 [0] : vector<32x130xf32> to vector<130xf32>
    %32 = vector.shape_cast %31 : vector<130xf32> to vector<1x130xf32>
    %cst_17 = arith.constant 3.200000e+01 : f32
    %33 = vector.broadcast %cst_17 : f32 to vector<1x130xf32>
    %34 = arith.divf %32, %33 : vector<1x130xf32>
    %35 = vector.broadcast %34 : vector<1x130xf32> to vector<32x130xf32>
    %36 = arith.subf %30, %35 : vector<32x130xf32>
    %37 = arith.mulf %36, %36 : vector<32x130xf32>
    %cst_18 = arith.constant dense<0.000000e+00> : vector<130xf32>
    %38 = vector.multi_reduction <add>, %37, %cst_18 [0] : vector<32x130xf32> to vector<130xf32>
    %39 = vector.shape_cast %38 : vector<130xf32> to vector<1x130xf32>
    %cst_19 = arith.constant 3.200000e+01 : f32
    %40 = vector.broadcast %cst_19 : f32 to vector<1x130xf32>
    %41 = arith.divf %39, %40 : vector<1x130xf32>
    %cst_20 = arith.constant 9.99999974E-6 : f32
    %42 = vector.broadcast %cst_20 : f32 to vector<1x130xf32>
    %43 = arith.addf %41, %42 : vector<1x130xf32>
    %44 = math.rsqrt %43 : vector<1x130xf32>
    %45 = vector.broadcast %44 : vector<1x130xf32> to vector<32x130xf32>
    %46 = arith.mulf %36, %45 : vector<32x130xf32>
    %47 = vector.broadcast %12 : vector<32x1xf32> to vector<32x130xf32>
    %48 = arith.mulf %46, %47 : vector<32x130xf32>
    %49 = vector.broadcast %13 : vector<32x1xf32> to vector<32x130xf32>
    %50 = arith.addf %48, %49 : vector<32x130xf32>
    %51 = vector.extract_strided_slice %9 {offsets = [0, 1], sizes = [1, 130], strides = [1, 1]} : vector<1x256xf32> to vector<1x130xf32>
    %52 = vector.broadcast %51 : vector<1x130xf32> to vector<32x130xf32>
    %53 = arith.mulf %50, %52 : vector<32x130xf32>
    %54 = vector.extract_strided_slice %53 {offsets = [0, 0], sizes = [32, 128], strides = [1, 1]} : vector<32x130xf32> to vector<32x128xf32>
    %55 = vector.extract_strided_slice %53 {offsets = [0, 1], sizes = [32, 128], strides = [1, 1]} : vector<32x130xf32> to vector<32x128xf32>
    %56 = vector.extract_strided_slice %53 {offsets = [0, 2], sizes = [32, 128], strides = [1, 1]} : vector<32x130xf32> to vector<32x128xf32>
    %57 = tpu.concatenate %54, %55, %56 in 0 : vector<32x128xf32>, vector<32x128xf32>, vector<32x128xf32> -> vector<96x128xf32>
    %c0_21 = arith.constant 0 : index
    %c0_22 = arith.constant 0 : index
    %58 = vector.load %arg8[%c0_21, %c0_22] : memref<32x96xf32, #tpu.memory_space<vmem>>, vector<32x96xf32>
    %cst_23 = arith.constant dense<0.000000e+00> : vector<32x128xf32>
    %59 = tpu.matmul %58, %57, %cst_23 {dimension_numbers = #tpu.dot_dimension_numbers<[1], [0], [0], [1], [0, 0, 1, 1], [], []>} : vector<32x96xf32>, vector<96x128xf32>, vector<32x128xf32> -> vector<32x128xf32>
    %60 = vector.broadcast %14 : vector<32x1xf32> to vector<32x128xf32>
    %61 = arith.addf %59, %60 : vector<32x128xf32>
    %cst_24 = arith.constant 0.000000e+00 : f32
    %62 = vector.broadcast %cst_24 : f32 to vector<32x128xf32>
    %63 = arith.maximumf %61, %62 : vector<32x128xf32>
    %cst_25 = arith.constant dense<0.000000e+00> : vector<128xf32>
    %64 = vector.multi_reduction <add>, %63, %cst_25 [0] : vector<32x128xf32> to vector<128xf32>
    %65 = vector.shape_cast %64 : vector<128xf32> to vector<1x128xf32>
    %cst_26 = arith.constant 3.200000e+01 : f32
    %66 = vector.broadcast %cst_26 : f32 to vector<1x128xf32>
    %67 = arith.divf %65, %66 : vector<1x128xf32>
    %68 = vector.broadcast %67 : vector<1x128xf32> to vector<32x128xf32>
    %69 = arith.subf %63, %68 : vector<32x128xf32>
    %70 = arith.mulf %69, %69 : vector<32x128xf32>
    %cst_27 = arith.constant dense<0.000000e+00> : vector<128xf32>
    %71 = vector.multi_reduction <add>, %70, %cst_27 [0] : vector<32x128xf32> to vector<128xf32>
    %72 = vector.shape_cast %71 : vector<128xf32> to vector<1x128xf32>
    %cst_28 = arith.constant 3.200000e+01 : f32
    %73 = vector.broadcast %cst_28 : f32 to vector<1x128xf32>
    %74 = arith.divf %72, %73 : vector<1x128xf32>
    %cst_29 = arith.constant 9.99999974E-6 : f32
    %75 = vector.broadcast %cst_29 : f32 to vector<1x128xf32>
    %76 = arith.addf %74, %75 : vector<1x128xf32>
    %77 = math.rsqrt %76 : vector<1x128xf32>
    %78 = vector.broadcast %77 : vector<1x128xf32> to vector<32x128xf32>
    %79 = arith.mulf %69, %78 : vector<32x128xf32>
    %80 = vector.broadcast %15 : vector<32x1xf32> to vector<32x128xf32>
    %81 = arith.mulf %79, %80 : vector<32x128xf32>
    %82 = vector.broadcast %16 : vector<32x1xf32> to vector<32x128xf32>
    %83 = arith.addf %81, %82 : vector<32x128xf32>
    %84 = vector.extract_strided_slice %9 {offsets = [0, 2], sizes = [1, 128], strides = [1, 1]} : vector<1x256xf32> to vector<1x128xf32>
    %85 = vector.broadcast %17 : vector<32x1xf32> to vector<32x128xf32>
    %86 = arith.mulf %85, %83 : vector<32x128xf32>
    %cst_30 = arith.constant dense<0.000000e+00> : vector<128xf32>
    %87 = vector.multi_reduction <add>, %86, %cst_30 [0] : vector<32x128xf32> to vector<128xf32>
    %88 = vector.shape_cast %87 : vector<128xf32> to vector<1x128xf32>
    %89 = vector.broadcast %18 : vector<1x1xf32> to vector<1x128xf32>
    %90 = arith.addf %88, %89 : vector<1x128xf32>
    %91 = arith.mulf %90, %84 : vector<1x128xf32>
    %c0_31 = arith.constant 0 : index
    %c0_32 = arith.constant 0 : index
    %c0_33 = arith.constant 0 : index
    %92 = vector.load %arg9[%c0_31, %c0_32, %c0_33] : memref<1x1x128xf32, #tpu.memory_space<vmem>>, vector<1x1x128xf32>
    %93 = vector.shape_cast %92 : vector<1x1x128xf32> to vector<1x128xf32>
    %94 = vector.shape_cast %91 : vector<1x128xf32> to vector<1x1x128xf32>
    tpu.vector_store %arg9[%c0_31, %c0_32, %c0_33], %94 {strides = array<i32>} : memref<1x1x128xf32, #tpu.memory_space<vmem>>, vector<1x1x128xf32>,
    return
  }
  func.func @transform_0(%arg0: i32, %arg1: i32) -> (i32, i32, i32) {
    %c0_i32 = arith.constant 0 : i32
    %c0_i32_0 = arith.constant 0 : i32
    return %arg0, %c0_i32, %arg1 : i32, i32, i32
  }
  func.func @transform_1(%arg0: i32, %arg1: i32) -> (i32, i32, i32) {
    %c1_i32 = arith.constant 1 : i32
    %0 = arith.addi %arg1, %c1_i32 : i32
    %c1_i32_0 = arith.constant 1 : i32
    %1 = arith.muli %0, %c1_i32_0 : i32
    %c0_i32 = arith.constant 0 : i32
    %c0_i32_1 = arith.constant 0 : i32
    return %arg0, %c0_i32, %1 : i32, i32, i32
  }
  func.func @transform_2(%arg0: i32, %arg1: i32) -> (i32, i32, i32) {
    %c0_i32 = arith.constant 0 : i32
    %c0_i32_0 = arith.constant 0 : i32
    return %arg0, %c0_i32, %arg1 : i32, i32, i32
  }
  func.func @transform_3(%arg0: i32, %arg1: i32) -> (i32, i32, i32) {
    %c1_i32 = arith.constant 1 : i32
    %0 = arith.addi %arg1, %c1_i32 : i32
    %c1_i32_0 = arith.constant 1 : i32
    %1 = arith.muli %0, %c1_i32_0 : i32
    %c0_i32 = arith.constant 0 : i32
    %c0_i32_1 = arith.constant 0 : i32
    return %arg0, %c0_i32, %1 : i32, i32, i32
  }
  func.func @transform_4(%arg0: i32, %arg1: i32) -> (i32, i32) {
    %c0_i32 = arith.constant 0 : i32
    %c0_i32_0 = arith.constant 0 : i32
    %c0_i32_1 = arith.constant 0 : i32
    return %c0_i32, %c0_i32_0 : i32, i32
  }
  func.func @transform_5(%arg0: i32, %arg1: i32) -> (i32, i32) {
    %c0_i32 = arith.constant 0 : i32
    %c0_i32_0 = arith.constant 0 : i32
    %c0_i32_1 = arith.constant 0 : i32
    return %c0_i32, %c0_i32_0 : i32, i32
  }
  func.func @transform_6(%arg0: i32, %arg1: i32) -> (i32, i32) {
    %c0_i32 = arith.constant 0 : i32
    %c0_i32_0 = arith.constant 0 : i32
    %c0_i32_1 = arith.constant 0 : i32
    return %c0_i32, %c0_i32_0 : i32, i32
  }
  func.func @transform_7(%arg0: i32, %arg1: i32) -> (i32, i32, i32) {
    %c0_i32 = arith.constant 0 : i32
    %c0_i32_0 = arith.constant 0 : i32
    return %arg0, %c0_i32, %arg1 : i32, i32, i32
  }
}

</mosaic_0001>

<llo_original>
// kernel: tpu_custom_call.1
$region0: #{tpu_custom_call.1}
  #allocation0 [shape = 'u32[]', space=smem, size = 0x4, offset = 0x4, fixed_abs, tag = 'smem constant byte address 0x4 - core index']
  #allocation1 [shape = 'u32[72,128]{1,0:T(1,128)}', space=vmem, size = 0x9000, scoped, tag = 'internal scratch']
  %s0 = inlined_call_operand.vmem [shape: f32[2,4,256], index: 0, kind: input, shape index: {}]
  %s1 = inlined_call_operand.vmem [shape: f32[2,4,256], index: 1, kind: input, shape index: {}]
  %s2 = inlined_call_operand.vmem [shape: f32[2,1,256], index: 2, kind: input, shape index: {}]
  %s3 = inlined_call_operand.vmem [shape: f32[2,1,256], index: 3, kind: input, shape index: {}]
  %s4 = inlined_call_operand.vmem [shape: f32[32,8], index: 4, kind: input, shape index: {}]
  %s5 = inlined_call_operand.vmem [shape: f32[32,12], index: 5, kind: input, shape index: {}]
  %s6 = inlined_call_operand.vmem [shape: f32[32,96], index: 6, kind: input, shape index: {}]
  %s7 = inlined_call_operand.hbm [shape: f32[2,1,128], index: 7, kind: output, shape index: {}]
  %s8 = sld [smem:[#allocation0]]
  $region61: #{tpu_custom_call.1} parent=0
    _
  %s10 = ssub.s32 1, %s8
  %s11 = scalar_select 0, %s10, %s8
  $region1: #{tpu_custom_call.1} parent=0
    #allocation2 [shape = 'u8[1024]{0}', space=vmem, size = 0x400, scoped, tag = 'output window, operand 0']
    #allocation3 [shape = 's32[2]{0}', space=sflag, size = 0x8, scoped, tag = 'scoped memory for tpu_custom_call.1']
    %12 = vsyncpa [#allocation3], 0
    %s13 = scalar_lea.sflag [#allocation3], 1
    %14 = vsyncpa %s13, 0
    loop: start=0, step=1, limit=4
    $region2: #{tpu_custom_call.1} parent=1 // loop_pre_header
      _
    $region3: #{tpu_custom_call.1} parent=1 // loop_header
      %s16 = sphi 0, %s20
      %p17 = scmp.ge.s32.totalorder %s16, 4
      %s23 = sphi 0, %s35
      %s24 = sphi 0, %s31
      %s25 = sphi 0, %s23
      %s26 = sphi 0, %s24
      %s27 = sphi 0, %s25
      %s28 = sphi 0, %s26
      %s40 = sphi 0, %s42
      %s43 = sphi 0, %s40
      %s44 = sphi 0, %s43
      %s60 = sphi 0, %s44
      %s70 = sphi 0, %s72
      %s73 = sphi 0, %s70
      %s74 = sphi 0, %s73
      %s90 = sphi 0, %s74
      %s98 = sphi 0, %s100
      %s101 = sphi 0, %s98
      %s102 = sphi 0, %s101
      %s118 = sphi 0, %s102
      %s128 = sphi 0, %s130
      %s131 = sphi 0, %s128
      %s132 = sphi 0, %s131
      %s148 = sphi 0, %s132
      %s152 = sphi 0, %s152
      %s154 = sphi 0, %s152
      %s155 = sphi 0, %s154
      %s169 = sphi 0, %s155
      %s173 = sphi 0, %s173
      %s175 = sphi 0, %s173
      %s176 = sphi 0, %s175
      %s190 = sphi 0, %s176
      %s194 = sphi 0, %s194
      %s196 = sphi 0, %s194
      %s197 = sphi 0, %s196
      %s211 = sphi 0, %s197
      %s219 = sphi 0, %s221
      %s222 = sphi 0, %s219
      %s223 = sphi 0, %s222
      %s239 = sphi 0, %s223
    $region4: #{tpu_custom_call.1} parent=1 // loop_header_branch
      %19 = sbr.rel (%p17) target = $region8
    $region5: #{tpu_custom_call.1} parent=1 // loop_body
      %s21 = ssub.s32 %s16, 1
      %s22 = ssub.s32 %s16, 2
      %s29 = sadd.s32 1, %s24
      %p30 = scmp.ge.s32.totalorder %s29, 1
      %s31 = scalar_select %p30, 0, %s29
      %s32 = sadd.s32 1, %s23
      %s33 = scalar_select %p30, %s32, %s23
      %p34 = scmp.ge.s32.totalorder %s33, 2
      %s35 = scalar_select %p34, 0, %s33
      %s36 = ssub.s32 %s23, %s35
      %s37 = ssub.s32 %s24, %s31
      %s38 = sor.u32 %s36, %s37
      %p39 = scmp.eq.s32.totalorder %s38, 0
      %s41 = sadd.s32 %s40, 1
      %s42 = scalar_select %p39, %s40, %s41
      %p45 = pneg %p39
      %p46 = scmp.eq.s32.totalorder %s16, 1
      %p47 = por %p45, %p46
      %p48 = scmp.ne.s32.totalorder %s40, %s43
      %p49 = scmp.eq.s32.totalorder %s16, 0
      %p50 = por %p48, %p49
      %p51 = scmp.ne.s32.totalorder %s40, %s43
      %p52 = scmp.eq.s32.totalorder %s21, 1
      %p53 = por %p51, %p52
      %p54 = scmp.ne.s32.totalorder %s43, %s44
      %p55 = scmp.eq.s32.totalorder %s21, 0
      %p56 = por %p54, %p55
      %p57 = scmp.ne.s32.totalorder %s43, %s44
      %p58 = scmp.eq.s32.totalorder %s22, 1
      %p59 = por %p57, %p58
      %p61 = scmp.ne.s32.totalorder %s44, %s60
      %p62 = scmp.eq.s32.totalorder %s22, 0
      %p63 = por %p61, %p62
      %s64 = sadd.s32 %s24, 1
      %s65 = sadd.s32 %s31, 1
      %s66 = ssub.s32 %s23, %s35
      %s67 = ssub.s32 %s64, %s65
      %s68 = sor.u32 %s66, %s67
      %p69 = scmp.eq.s32.totalorder %s68, 0
      %s71 = sadd.s32 %s70, 1
      %s72 = scalar_select %p69, %s70, %s71
      %p75 = pneg %p69
      %p76 = scmp.eq.s32.totalorder %s16, 1
      %p77 = por %p75, %p76
      %p78 = scmp.ne.s32.totalorder %s70, %s73
      %p79 = scmp.eq.s32.totalorder %s16, 0
      %p80 = por %p78, %p79
      %p81 = scmp.ne.s32.totalorder %s70, %s73
      %p82 = scmp.eq.s32.totalorder %s21, 1
      %p83 = por %p81, %p82
      %p84 = scmp.ne.s32.totalorder %s73, %s74
      %p85 = scmp.eq.s32.totalorder %s21, 0
      %p86 = por %p84, %p85
      %p87 = scmp.ne.s32.totalorder %s73, %s74
      %p88 = scmp.eq.s32.totalorder %s22, 1
      %p89 = por %p87, %p88
      %p91 = scmp.ne.s32.totalorder %s74, %s90
      %p92 = scmp.eq.s32.totalorder %s22, 0
      %p93 = por %p91, %p92
      %s94 = ssub.s32 %s23, %s35
      %s95 = ssub.s32 %s24, %s31
      %s96 = sor.u32 %s94, %s95
      %p97 = scmp.eq.s32.totalorder %s96, 0
      %s99 = sadd.s32 %s98, 1
      %s100 = scalar_select %p97, %s98, %s99
      %p103 = pneg %p97
      %p104 = scmp.eq.s32.totalorder %s16, 1
      %p105 = por %p103, %p104
      %p106 = scmp.ne.s32.totalorder %s98, %s101
      %p107 = scmp.eq.s32.totalorder %s16, 0
      %p108 = por %p106, %p107
      %p109 = scmp.ne.s32.totalorder %s98, %s101
      %p110 = scmp.eq.s32.totalorder %s21, 1
      %p111 = por %p109, %p110
      %p112 = scmp.ne.s32.totalorder %s101, %s102
      %p113 = scmp.eq.s32.totalorder %s21, 0
      %p114 = por %p112, %p113
      %p115 = scmp.ne.s32.totalorder %s101, %s102
      %p116 = scmp.eq.s32.totalorder %s22, 1
      %p117 = por %p115, %p116
      %p119 = scmp.ne.s32.totalorder %s102, %s118
      %p120 = scmp.eq.s32.totalorder %s22, 0
      %p121 = por %p119, %p120
      %s122 = sadd.s32 %s24, 1
      %s123 = sadd.s32 %s31, 1
      %s124 = ssub.s32 %s23, %s35
      %s125 = ssub.s32 %s122, %s123
      %s126 = sor.u32 %s124, %s125
      %p127 = scmp.eq.s32.totalorder %s126, 0
      %s129 = sadd.s32 %s128, 1
      %s130 = scalar_select %p127, %s128, %s129
      %p133 = pneg %p127
      %p134 = scmp.eq.s32.totalorder %s16, 1
      %p135 = por %p133, %p134
      %p136 = scmp.ne.s32.totalorder %s128, %s131
      %p137 = scmp.eq.s32.totalorder %s16, 0
      %p138 = por %p136, %p137
      %p139 = scmp.ne.s32.totalorder %s128, %s131
      %p140 = scmp.eq.s32.totalorder %s21, 1
      %p141 = por %p139, %p140
      %p142 = scmp.ne.s32.totalorder %s131, %s132
      %p143 = scmp.eq.s32.totalorder %s21, 0
      %p144 = por %p142, %p143
      %p145 = scmp.ne.s32.totalorder %s131, %s132
      %p146 = scmp.eq.s32.totalorder %s22, 1
      %p147 = por %p145, %p146
      %p149 = scmp.ne.s32.totalorder %s132, %s148
      %p150 = scmp.eq.s32.totalorder %s22, 0
      %p151 = por %p149, %p150
      %s153 = sadd.s32 %s152, 1
      %p156 = scmp.eq.s32.totalorder %s16, 1
      %p157 = scmp.ne.s32.totalorder %s152, %s154
      %p158 = scmp.eq.s32.totalorder %s16, 0
      %p159 = por %p157, %p158
      %p160 = scmp.ne.s32.totalorder %s152, %s154
      %p161 = scmp.eq.s32.totalorder %s21, 1
      %p162 = por %p160, %p161
      %p163 = scmp.ne.s32.totalorder %s154, %s155
      %p164 = scmp.eq.s32.totalorder %s21, 0
      %p165 = por %p163, %p164
      %p166 = scmp.ne.s32.totalorder %s154, %s155
      %p167 = scmp.eq.s32.totalorder %s22, 1
      %p168 = por %p166, %p167
      %p170 = scmp.ne.s32.totalorder %s155, %s169
      %p171 = scmp.eq.s32.totalorder %s22, 0
      %p172 = por %p170, %p171
      %s174 = sadd.s32 %s173, 1
      %p177 = scmp.eq.s32.totalorder %s16, 1
      %p178 = scmp.ne.s32.totalorder %s173, %s175
      %p179 = scmp.eq.s32.totalorder %s16, 0
      %p180 = por %p178, %p179
      %p181 = scmp.ne.s32.totalorder %s173, %s175
      %p182 = scmp.eq.s32.totalorder %s21, 1
      %p183 = por %p181, %p182
      %p184 = scmp.ne.s32.totalorder %s175, %s176
      %p185 = scmp.eq.s32.totalorder %s21, 0
      %p186 = por %p184, %p185
      %p187 = scmp.ne.s32.totalorder %s175, %s176
      %p188 = scmp.eq.s32.totalorder %s22, 1
      %p189 = por %p187, %p188
      %p191 = scmp.ne.s32.totalorder %s176, %s190
      %p192 = scmp.eq.s32.totalorder %s22, 0
      %p193 = por %p191, %p192
      %s195 = sadd.s32 %s194, 1
      %p198 = scmp.eq.s32.totalorder %s16, 1
      %p199 = scmp.ne.s32.totalorder %s194, %s196
      %p200 = scmp.eq.s32.totalorder %s16, 0
      %p201 = por %p199, %p200
      %p202 = scmp.ne.s32.totalorder %s194, %s196
      %p203 = scmp.eq.s32.totalorder %s21, 1
      %p204 = por %p202, %p203
      %p205 = scmp.ne.s32.totalorder %s196, %s197
      %p206 = scmp.eq.s32.totalorder %s21, 0
      %p207 = por %p205, %p206
      %p208 = scmp.ne.s32.totalorder %s196, %s197
      %p209 = scmp.eq.s32.totalorder %s22, 1
      %p210 = por %p208, %p209
      %p212 = scmp.ne.s32.totalorder %s197, %s211
      %p213 = scmp.eq.s32.totalorder %s22, 0
      %p214 = por %p212, %p213
      %s215 = ssub.s32 %s23, %s35
      %s216 = ssub.s32 %s24, %s31
      %s217 = sor.u32 %s215, %s216
      %p218 = scmp.eq.s32.totalorder %s217, 0
      %s220 = sadd.s32 %s219, 1
      %s221 = scalar_select %p218, %s219, %s220
      %p224 = pneg %p218
      %p225 = scmp.eq.s32.totalorder %s16, 1
      %p226 = por %p224, %p225
      %p227 = scmp.ne.s32.totalorder %s219, %s222
      %p228 = scmp.eq.s32.totalorder %s16, 0
      %p229 = por %p227, %p228
      %p230 = scmp.ne.s32.totalorder %s219, %s222
      %p231 = scmp.eq.s32.totalorder %s21, 1
      %p232 = por %p230, %p231
      %p233 = scmp.ne.s32.totalorder %s222, %s223
      %p234 = scmp.eq.s32.totalorder %s21, 0
      %p235 = por %p233, %p234
      %p236 = scmp.ne.s32.totalorder %s222, %s223
      %p237 = scmp.eq.s32.totalorder %s22, 1
      %p238 = por %p236, %p237
      %p240 = scmp.ne.s32.totalorder %s223, %s239
      %p241 = scmp.eq.s32.totalorder %s22, 0
      %p242 = por %p240, %p241
      %p243 = scmp.le.s32.totalorder 1, %s16
      %p244 = scmp.lt.s32.totalorder %s16, 3
      %p245 = pnand %p243, %p244
      %p246 = pneg %p245
      // Predicated region
      $region9: #{tpu_custom_call.1} parent=5 // pred_check
        _
      $region10: #{tpu_custom_call.1} parent=5 // pred_check_branch
        %248 = sbr.rel (%p245) target = $region12
      $region11: #{tpu_custom_call.1} parent=5 // pred_region
        %s249 = ssub.s32 %s16, 1
        // Predicated region
        $region13: #{tpu_custom_call.1} parent=11 // pred_check
          %p250 = pneg %p165
        $region14: #{tpu_custom_call.1} parent=11 // pred_check_branch
          %252 = sbr.rel (%p250) target = $region16
        $region15: #{tpu_custom_call.1} parent=11 // pred_region
          _
        $region16: #{tpu_custom_call.1} parent=11 // pred_fallthru
          _
        // Predicated region
        $region17: #{tpu_custom_call.1} parent=11 // pred_check
          %p253 = pneg %p186
        $region18: #{tpu_custom_call.1} parent=11 // pred_check_branch
          %255 = sbr.rel (%p253) target = $region20
        $region19: #{tpu_custom_call.1} parent=11 // pred_region
          _
        $region20: #{tpu_custom_call.1} parent=11 // pred_fallthru
          _
        // Predicated region
        $region21: #{tpu_custom_call.1} parent=11 // pred_check
          %p256 = pneg %p207
        $region22: #{tpu_custom_call.1} parent=11 // pred_check_branch
          %258 = sbr.rel (%p256) target = $region24
        $region23: #{tpu_custom_call.1} parent=11 // pred_region
          _
        $region24: #{tpu_custom_call.1} parent=11 // pred_fallthru
          _
      $region12: #{tpu_custom_call.1} parent=5 // pred_fallthru
        _
      %p259 = scmp.lt.s32.totalorder %s16, 2
      // Predicated region
      $region25: #{tpu_custom_call.1} parent=5 // pred_check
        %p260 = pneg %p259
      $region26: #{tpu_custom_call.1} parent=5 // pred_check_branch
        %262 = sbr.rel (%p260) target = $region28
      $region27: #{tpu_custom_call.1} parent=5 // pred_region
        // Predicated region
        $region29: #{tpu_custom_call.1} parent=27 // pred_check
          %p263 = pneg %p50
        $region30: #{tpu_custom_call.1} parent=27 // pred_check_branch
          %265 = sbr.rel (%p263) target = $region32
        $region31: #{tpu_custom_call.1} parent=27 // pred_region
          %p266 = scmp.lt.s32.totalorder %s23, 1
          %s267 = scalar_select %p266, %s23, 1
          %p268 = scmp.lt.s32.totalorder %s24, 1
          %s269 = scalar_select %p268, %s24, 1
          %s270 = smul.addr %s267, 2
          %s271 = sadd.s32 %s269, %s270
          %s272 = smul.addr %s271, 4
          %s273 = scalar_lea.vmem %s0, %s272
        $region32: #{tpu_custom_call.1} parent=27 // pred_fallthru
          _
        // Predicated region
        $region33: #{tpu_custom_call.1} parent=27 // pred_check
          %p274 = pneg %p80
        $region34: #{tpu_custom_call.1} parent=27 // pred_check_branch
          %276 = sbr.rel (%p274) target = $region36
        $region35: #{tpu_custom_call.1} parent=27 // pred_region
          %s277 = sadd.s32 %s24, 1
          %p278 = scmp.lt.s32.totalorder %s23, 1
          %s279 = scalar_select %p278, %s23, 1
          %p280 = scmp.lt.s32.totalorder %s277, 1
          %s281 = scalar_select %p280, %s277, 1
          %s282 = smul.addr %s279, 2
          %s283 = sadd.s32 %s281, %s282
          %s284 = smul.addr %s283, 4
          %s285 = scalar_lea.vmem %s1, %s284
          %s286 = sadd.s32 %s24, 1
        $region36: #{tpu_custom_call.1} parent=27 // pred_fallthru
          _
        // Predicated region
        $region37: #{tpu_custom_call.1} parent=27 // pred_check
          %p287 = pneg %p108
        $region38: #{tpu_custom_call.1} parent=27 // pred_check_branch
          %289 = sbr.rel (%p287) target = $region40
        $region39: #{tpu_custom_call.1} parent=27 // pred_region
          %p290 = scmp.lt.s32.totalorder %s23, 1
          %s291 = scalar_select %p290, %s23, 1
          %p292 = scmp.lt.s32.totalorder %s24, 1
          %s293 = scalar_select %p292, %s24, 1
          %s294 = smul.addr %s291, 2
          %s295 = sadd.s32 %s293, %s294
          %s296 = scalar_lea.vmem %s2, %s295
        $region40: #{tpu_custom_call.1} parent=27 // pred_fallthru
          _
        // Predicated region
        $region41: #{tpu_custom_call.1} parent=27 // pred_check
          %p297 = pneg %p138
        $region42: #{tpu_custom_call.1} parent=27 // pred_check_branch
          %299 = sbr.rel (%p297) target = $region44
        $region43: #{tpu_custom_call.1} parent=27 // pred_region
          %s300 = sadd.s32 %s24, 1
          %p301 = scmp.lt.s32.totalorder %s23, 1
          %s302 = scalar_select %p301, %s23, 1
          %p303 = scmp.lt.s32.totalorder %s300, 1
          %s304 = scalar_select %p303, %s300, 1
          %s305 = smul.addr %s302, 2
          %s306 = sadd.s32 %s304, %s305
          %s307 = scalar_lea.vmem %s3, %s306
          %s308 = sadd.s32 %s24, 1
        $region44: #{tpu_custom_call.1} parent=27 // pred_fallthru
          _
      $region28: #{tpu_custom_call.1} parent=5 // pred_fallthru
        _
      %p309 = scmp.le.s32.totalorder 1, %s16
      %p310 = scmp.lt.s32.totalorder %s16, 3
      %p311 = pnand %p309, %p310
      %p312 = pneg %p311
      // Predicated region
      $region45: #{tpu_custom_call.1} parent=5 // pred_check
        _
      $region46: #{tpu_custom_call.1} parent=5 // pred_check_branch
        %314 = sbr.rel (%p311) target = $region48
      $region47: #{tpu_custom_call.1} parent=5 // pred_region
        %s315 = ssub.s32 %s16, 1
        %p316 = scmp.lt.s32.totalorder %s25, 1
        %s317 = scalar_select %p316, %s25, 1
        %p318 = scmp.lt.s32.totalorder %s26, 1
        %s319 = scalar_select %p318, %s26, 1
        %s320 = smul.addr %s317, 2
        %s321 = sadd.s32 %s319, %s320
        %s322 = smul.addr %s321, 4
        %s323 = scalar_lea.vmem %s0, %s322
        %p324 = pneg %p56
        %p325 = pneg %p53
        %s326 = sadd.s32 %s26, 1
        %p327 = scmp.lt.s32.totalorder %s25, 1
        %s328 = scalar_select %p327, %s25, 1
        %p329 = scmp.lt.s32.totalorder %s326, 1
        %s330 = scalar_select %p329, %s326, 1
        %s331 = smul.addr %s328, 2
        %s332 = sadd.s32 %s330, %s331
        %s333 = smul.addr %s332, 4
        %s334 = scalar_lea.vmem %s1, %s333
        %p335 = pneg %p86
        %p336 = pneg %p83
        %p337 = scmp.lt.s32.totalorder %s25, 1
        %s338 = scalar_select %p337, %s25, 1
        %p339 = scmp.lt.s32.totalorder %s26, 1
        %s340 = scalar_select %p339, %s26, 1
        %s341 = smul.addr %s338, 2
        %s342 = sadd.s32 %s340, %s341
        %s343 = scalar_lea.vmem %s2, %s342
        %p344 = pneg %p114
        %p345 = pneg %p111
        %s346 = sadd.s32 %s26, 1
        %p347 = scmp.lt.s32.totalorder %s25, 1
        %s348 = scalar_select %p347, %s25, 1
        %p349 = scmp.lt.s32.totalorder %s346, 1
        %s350 = scalar_select %p349, %s346, 1
        %s351 = smul.addr %s348, 2
        %s352 = sadd.s32 %s350, %s351
        %s353 = scalar_lea.vmem %s3, %s352
        %p354 = pneg %p144
        %p355 = pneg %p141
        %p356 = pneg %p165
        %p357 = pneg %p162
        %p358 = pneg %p186
        %p359 = pneg %p183
        %p360 = pneg %p207
        %p361 = pneg %p204
        %p362 = pneg %p235
        %p363 = pneg %p232
        %s364 = sand.u32 %s222, 1
        %s365 = scalar_lea.sflag [#allocation3], %s364
        %s366 = sand.u32 %s222, 1
        %s367 = scalar_lea.vmem [#allocation2], %s366
        %p368 = scmp.lt.s32.totalorder %s25, 1
        %s369 = scalar_select %p368, %s25, 1
        %p370 = scmp.lt.s32.totalorder %s26, 1
        %s371 = scalar_select %p370, %s26, 1
        %s372 = smul.addr %s369, 2
        %s373 = sadd.s32 %s371, %s372
        %s374 = smul.addr %s373, 4
        %s375 = scalar_lea.vmem %s0, %s374
        %s376 = sadd.s32 %s26, 1
        %p377 = scmp.lt.s32.totalorder %s25, 1
        %s378 = scalar_select %p377, %s25, 1
        %p379 = scmp.lt.s32.totalorder %s376, 1
        %s380 = scalar_select %p379, %s376, 1
        %s381 = smul.addr %s378, 2
        %s382 = sadd.s32 %s380, %s381
        %s383 = smul.addr %s382, 4
        %s384 = scalar_lea.vmem %s1, %s383
        %s385 = sadd.s32 %s26, 1
        %p386 = scmp.lt.s32.totalorder %s25, 1
        %s387 = scalar_select %p386, %s25, 1
        %p388 = scmp.lt.s32.totalorder %s26, 1
        %s389 = scalar_select %p388, %s26, 1
        %s390 = smul.addr %s387, 2
        %s391 = sadd.s32 %s389, %s390
        %s392 = scalar_lea.vmem %s2, %s391
        %s393 = sadd.s32 %s26, 1
        %p394 = scmp.lt.s32.totalorder %s25, 1
        %s395 = scalar_select %p394, %s25, 1
        %p396 = scmp.lt.s32.totalorder %s393, 1
        %s397 = scalar_select %p396, %s393, 1
        %s398 = smul.addr %s395, 2
        %s399 = sadd.s32 %s397, %s398
        %s400 = scalar_lea.vmem %s3, %s399
        %s401 = sadd.s32 %s26, 1
        %v402 = vld [vmem:[%s375] sm:$0xf]
        %v403 = vld [vmem:[%s384] sm:$0xf]
        %v404 = vld [vmem:[%s392] sm:$0x1]
        %v405 = vld [vmem:[%s400] sm:$0x1]
        %v406 = vld [vmem:[%s4] sm:$0xff]
        %v407 = vld [vmem:[%s4 + $0x8] sm:$0xff]
        %v408 = vld [vmem:[%s4 + $0x10] sm:$0xff]
        %v409 = vld [vmem:[%s4 + $0x18] sm:$0xff]
        %v410 = vperm.slane %v404, 0
        %v411 = vperm.slane %v405, 0
        %v412 = vmul.f32 %v402, %v410
        %v413 = vmul.f32 %v403, %v411
        %v416 = vrot.slane %v412, 4
        %v417 = vrot.slane %v413, 4
        %418 = vrot.lane.b32.xlu0 %v416, 127
        %v419 = vpop.permute.xlu0 %418
        %420 = vrot.lane.b32.xlu0 %v417, 127
        %v421 = vpop.permute.xlu0 %420
        %vm422 = vcmask 1039360
        %v423 = vsel %vm422, %v419, %v421
        %426 = vrot.lane.b32.xlu0 %v412, 126
        %v427 = vpop.permute.xlu0 %426
        %428 = vrot.lane.b32.xlu0 %v413, 126
        %v429 = vpop.permute.xlu0 %428
        %vm430 = vcmask 1031168
        %v431 = vsel %vm430, %v427, %v429
        %vm432 = vcmask 1043456
        %v433 = vsel %vm432, %v412, %v423
        %v434 = vsel %vm432, %v413, %v421
        %v435 = vld [vmem:[%s5] sm:$0xff]
        %v436 = vld [vmem:[%s5 + $0x8] sm:$0xff]
        %v437 = vld [vmem:[%s5 + $0x10] sm:$0xff]
        %v438 = vld [vmem:[%s5 + $0x18] sm:$0xff]
        %440 = vset.pattern.permute.xlu0 0
        %441 = vperm.xlu0 %440, %v406
        %v442 = vpop.permute.xlu0 %441
        %445 = vset.pattern.permute.xlu0 0
        %446 = vperm.xlu0 %445, %v407
        %v447 = vpop.permute.xlu0 %446
        %450 = vset.pattern.permute.xlu0 0
        %451 = vperm.xlu0 %450, %v408
        %v452 = vpop.permute.xlu0 %451
        %455 = vset.pattern.permute.xlu0 0
        %456 = vperm.xlu0 %455, %v409
        %v457 = vpop.permute.xlu0 %456
        %vm459 = vcmask 97280
        %v461 = vsel %vm459, %v435, 0
        %v464 = vsel %vm459, %v436, 0
        %v467 = vsel %vm459, %v437, 0
        %v470 = vsel %vm459, %v438, 0
        %v472 = vsel %vm432, %v431, 0
        %v474 = vsel %vm432, %v429, 0
        %476 = vmatpush.msra.mxu0 0.0
        %477 = vmatpush.msra.mxu0 0.0
        %478 = vmatpush.msra.mxu0 0.0
        %479 = vmatpush.msra.mxu0 0.0
        %480 = vmatpush.msra.mxu0 0.0
        %481 = vmatpush.msra.mxu0 0.0
        %482 = vmatpush.msra.mxu0 0.0
        %483 = vmatpush.msra.mxu0 0.0
        %484 = vmatpush.msra.mxu0 0.0
        %485 = vmatpush.msra.mxu0 0.0
        %486 = vmatpush.msra.mxu0 0.0
        %487 = vmatpush.msra.mxu0 0.0
        %488 = vmatpush.msra.mxu0 0.0
        %489 = vmatpush.msra.mxu0 0.0
        %490 = vmatpush.msra.mxu0 %v472
        %491 = vmatpush.msra.mxu0 %v433
        %492 = vmatmul.f32.gmra.mxu0 %v461
        %v493 = vpop.f32.mrf.mxu0
        %v494 = vadd.f32 %v442, %v493
        %495 = vmatmul.f32.gmra.mxu0 %v464
        %v496 = vpop.f32.mrf.mxu0
        %v497 = vadd.f32 %v447, %v496
        %498 = vmatmul.f32.gmra.mxu0 %v467
        %v499 = vpop.f32.mrf.mxu0
        %v500 = vadd.f32 %v452, %v499
        %501 = vmatmul.f32.gmra.mxu0 %v470
        %v502 = vpop.f32.mrf.mxu0
        %v503 = vadd.f32 %v457, %v502
        %504 = vdwg.mxu0
        %505 = vmatpush.msra.mxu0 0.0
        %506 = vmatpush.msra.mxu0 0.0
        %507 = vmatpush.msra.mxu0 0.0
        %508 = vmatpush.msra.mxu0 0.0
        %509 = vmatpush.msra.mxu0 0.0
        %510 = vmatpush.msra.mxu0 0.0
        %511 = vmatpush.msra.mxu0 0.0
        %512 = vmatpush.msra.mxu0 0.0
        %513 = vmatpush.msra.mxu0 0.0
        %514 = vmatpush.msra.mxu0 0.0
        %515 = vmatpush.msra.mxu0 0.0
        %516 = vmatpush.msra.mxu0 0.0
        %517 = vmatpush.msra.mxu0 0.0
        %518 = vmatpush.msra.mxu0 0.0
        %519 = vmatpush.msra.mxu0 %v474
        %520 = vmatpush.msra.mxu0 %v434
        %521 = vmatmul.f32.gmra.mxu0 %v461
        %v522 = vpop.f32.mrf.mxu0
        %v523 = vadd.f32 %v442, %v522
        %524 = vmatmul.f32.gmra.mxu0 %v464
        %v525 = vpop.f32.mrf.mxu0
        %v526 = vadd.f32 %v447, %v525
        %527 = vmatmul.f32.gmra.mxu0 %v467
        %v528 = vpop.f32.mrf.mxu0
        %v529 = vadd.f32 %v452, %v528
        %530 = vmatmul.f32.gmra.mxu0 %v470
        %v531 = vpop.f32.mrf.mxu0
        %v532 = vadd.f32 %v457, %v531
        %533 = vdwg.mxu0
        %v534 = vmax.f32 %v494, 0.0
        %v535 = vmax.f32 %v523, 0.0
        %v536 = vmax.f32 %v497, 0.0
        %v537 = vmax.f32 %v526, 0.0
        %v538 = vmax.f32 %v500, 0.0
        %v539 = vmax.f32 %v529, 0.0
        %v540 = vmax.f32 %v503, 0.0
        %v541 = vmax.f32 %v532, 0.0
        %v542 = vadd.f32 %v534, %v536
        %v543 = vadd.f32 %v542, %v538
        %v544 = vadd.f32 %v543, %v540
        %v545 = vrot.slane %v544, 4
        %v546 = vadd.f32 %v544, %v545
        %v547 = vrot.slane %v546, 2
        %v548 = vadd.f32 %v546, %v547
        %v549 = vrot.slane %v548, 1
        %v550 = vadd.f32 %v548, %v549
        %vm551 = vcmask 15360
        %v552 = vsel %vm551, %v535, 0.0
        %v553 = vsel %vm551, %v537, 0.0
        %v554 = vadd.f32 %v552, %v553
        %v555 = vsel %vm551, %v539, 0.0
        %v556 = vadd.f32 %v554, %v555
        %v557 = vsel %vm551, %v541, 0.0
        %v558 = vadd.f32 %v556, %v557
        %v559 = vrot.slane %v558, 4
        %v560 = vadd.f32 %v558, %v559
        %v561 = vrot.slane %v560, 2
        %v562 = vadd.f32 %v560, %v561
        %v563 = vrot.slane %v562, 1
        %v564 = vadd.f32 %v562, %v563
        %v565 = vrcp.pop 32.0
        %v566 = vmul.f32 32.0, %v565
        %v567 = vsub.f32 1.0, %v566
        %v568 = vmul.f32 %v565, %v567
        %v569 = vadd.f32 %v565, %v568
        %vm570 = vweird.f32 %v565
        %v571 = vsel %vm570, %v565, %v569
        %v572 = vmul.f32 %v550, %v571
        %v573 = vmul.f32 %v564, %v571
        %v574 = vsub.f32 %v534, %v572
        %v575 = vsub.f32 %v535, %v573
        %v576 = vsub.f32 %v536, %v572
        %v577 = vsub.f32 %v537, %v573
        %v578 = vsub.f32 %v538, %v572
        %v579 = vsub.f32 %v539, %v573
        %v580 = vsub.f32 %v540, %v572
        %v581 = vsub.f32 %v541, %v573
        %v582 = vmul.f32 %v574, %v574
        %v583 = vmul.f32 %v575, %v575
        %v584 = vmul.f32 %v576, %v576
        %v585 = vmul.f32 %v577, %v577
        %v586 = vmul.f32 %v578, %v578
        %v587 = vmul.f32 %v579, %v579
        %v588 = vmul.f32 %v580, %v580
        %v589 = vmul.f32 %v581, %v581
        %v590 = vadd.f32 %v582, %v584
        %v591 = vadd.f32 %v590, %v586
        %v592 = vadd.f32 %v591, %v588
        %v593 = vrot.slane %v592, 4
        %v594 = vadd.f32 %v592, %v593
        %v595 = vrot.slane %v594, 2
        %v596 = vadd.f32 %v594, %v595
        %v597 = vrot.slane %v596, 1
        %v598 = vadd.f32 %v596, %v597
        %v599 = vsel %vm551, %v583, 0.0
        %v600 = vsel %vm551, %v585, 0.0
        %v601 = vadd.f32 %v599, %v600
        %v602 = vsel %vm551, %v587, 0.0
        %v603 = vadd.f32 %v601, %v602
        %v604 = vsel %vm551, %v589, 0.0
        %v605 = vadd.f32 %v603, %v604
        %v606 = vrot.slane %v605, 4
        %v607 = vadd.f32 %v605, %v606
        %v608 = vrot.slane %v607, 2
        %v609 = vadd.f32 %v607, %v608
        %v610 = vrot.slane %v609, 1
        %v611 = vadd.f32 %v609, %v610
        %v612 = vmul.f32 %v598, %v571
        %v613 = vmul.f32 %v611, %v571
        %v614 = vadd.f32 %v612, 1e-05
        %v615 = vadd.f32 %v613, 1e-05
        %v616 = vrsqrt.pop %v614
        %v617 = vmul.f32 %v616, %v614
        %v618 = vmul.f32 %v617, %v616
        %v619 = vmul.f32 0.5, %v618
        %v620 = vsub.f32 1.5, %v619
        %v621 = vmul.f32 %v616, %v620
        %vm622 = vweird.f32 %v614
        %vm623 = vweird.f32 %v616
        %vm624 = vmor %vm622, %vm623
        %v625 = vsel %vm624, %v616, %v621
        %v626 = vrsqrt.pop %v615
        %v627 = vmul.f32 %v626, %v615
        %v628 = vmul.f32 %v627, %v626
        %v629 = vmul.f32 0.5, %v628
        %v630 = vsub.f32 1.5, %v629
        %v631 = vmul.f32 %v626, %v630
        %vm632 = vweird.f32 %v615
        %vm633 = vweird.f32 %v626
        %vm634 = vmor %vm632, %vm633
        %v635 = vsel %vm634, %v626, %v631
        %v636 = vmul.f32 %v574, %v625
        %v637 = vmul.f32 %v575, %v635
        %v638 = vmul.f32 %v576, %v625
        %v639 = vmul.f32 %v577, %v635
        %v640 = vmul.f32 %v578, %v625
        %v641 = vmul.f32 %v579, %v635
        %v642 = vmul.f32 %v580, %v625
        %v643 = vmul.f32 %v581, %v635
        %644 = vset.pattern.permute.xlu0 1
        %645 = vperm.xlu0 %644, %v406
        %v646 = vpop.permute.xlu0 %645
        %648 = vset.pattern.permute.xlu0 1
        %649 = vperm.xlu0 %648, %v407
        %v650 = vpop.permute.xlu0 %649
        %652 = vset.pattern.permute.xlu0 1
        %653 = vperm.xlu0 %652, %v408
        %v654 = vpop.permute.xlu0 %653
        %656 = vset.pattern.permute.xlu0 1
        %657 = vperm.xlu0 %656, %v409
        %v658 = vpop.permute.xlu0 %657
        %v660 = vmul.f32 %v636, %v646
        %v661 = vmul.f32 %v637, %v646
        %v662 = vmul.f32 %v638, %v650
        %v663 = vmul.f32 %v639, %v650
        %v664 = vmul.f32 %v640, %v654
        %v665 = vmul.f32 %v641, %v654
        %v666 = vmul.f32 %v642, %v658
        %v667 = vmul.f32 %v643, %v658
        %668 = vset.pattern.permute.xlu0 2
        %669 = vperm.xlu0 %668, %v406
        %v670 = vpop.permute.xlu0 %669
        %672 = vset.pattern.permute.xlu0 2
        %673 = vperm.xlu0 %672, %v407
        %v674 = vpop.permute.xlu0 %673
        %676 = vset.pattern.permute.xlu0 2
        %677 = vperm.xlu0 %676, %v408
        %v678 = vpop.permute.xlu0 %677
        %680 = vset.pattern.permute.xlu0 2
        %681 = vperm.xlu0 %680, %v409
        %v682 = vpop.permute.xlu0 %681
        %v684 = vadd.f32 %v660, %v670
        %v685 = vadd.f32 %v661, %v670
        %v686 = vadd.f32 %v662, %v674
        %v687 = vadd.f32 %v663, %v674
        %v688 = vadd.f32 %v664, %v678
        %v689 = vadd.f32 %v665, %v678
        %v690 = vadd.f32 %v666, %v682
        %v691 = vadd.f32 %v667, %v682
        %694 = vrot.lane.b32.xlu0 %v410, 127
        %v695 = vpop.permute.xlu0 %694
        %696 = vrot.lane.b32.xlu0 %v411, 127
        %v697 = vpop.permute.xlu0 %696
        %v698 = vsel %vm422, %v695, %v697
        %v701 = vmul.f32 %v684, %v698
        %v702 = vmul.f32 %v685, %v697
        %v703 = vmul.f32 %v686, %v698
        %v704 = vmul.f32 %v687, %v697
        %v705 = vmul.f32 %v688, %v698
        %v706 = vmul.f32 %v689, %v697
        %v707 = vmul.f32 %v690, %v698
        %v708 = vmul.f32 %v691, %v697
        %717 = vrot.lane.b32.xlu0 %v701, 127
        %v718 = vpop.permute.xlu0 %717
        %719 = vrot.lane.b32.xlu0 %v702, 127
        %v720 = vpop.permute.xlu0 %719
        %721 = vrot.lane.b32.xlu0 %v703, 127
        %v722 = vpop.permute.xlu0 %721
        %723 = vrot.lane.b32.xlu0 %v704, 127
        %v724 = vpop.permute.xlu0 %723
        %725 = vrot.lane.b32.xlu0 %v705, 127
        %v726 = vpop.permute.xlu0 %725
        %727 = vrot.lane.b32.xlu0 %v706, 127
        %v728 = vpop.permute.xlu0 %727
        %729 = vrot.lane.b32.xlu0 %v707, 127
        %v730 = vpop.permute.xlu0 %729
        %731 = vrot.lane.b32.xlu0 %v708, 127
        %v732 = vpop.permute.xlu0 %731
        %v733 = vsel %vm422, %v718, %v720
        %v734 = vsel %vm422, %v722, %v724
        %v735 = vsel %vm422, %v726, %v728
        %v736 = vsel %vm422, %v730, %v732
        %741 = vrot.lane.b32.xlu0 %v701, 126
        %v742 = vpop.permute.xlu0 %741
        %743 = vrot.lane.b32.xlu0 %v702, 126
        %v744 = vpop.permute.xlu0 %743
        %745 = vrot.lane.b32.xlu0 %v703, 126
        %v746 = vpop.permute.xlu0 %745
        %747 = vrot.lane.b32.xlu0 %v704, 126
        %v748 = vpop.permute.xlu0 %747
        %749 = vrot.lane.b32.xlu0 %v705, 126
        %v750 = vpop.permute.xlu0 %749
        %751 = vrot.lane.b32.xlu0 %v706, 126
        %v752 = vpop.permute.xlu0 %751
        %753 = vrot.lane.b32.xlu0 %v707, 126
        %v754 = vpop.permute.xlu0 %753
        %755 = vrot.lane.b32.xlu0 %v708, 126
        %v756 = vpop.permute.xlu0 %755
        %v757 = vsel %vm430, %v742, %v744
        %v758 = vsel %vm430, %v746, %v748
        %v759 = vsel %vm430, %v750, %v752
        %v760 = vsel %vm430, %v754, %v756
        %v765 = vld [vmem:[%s6] sm:$0xff]
        %v766 = vld [vmem:[%s6 + $0x8] sm:$0xff]
        %v767 = vld [vmem:[%s6 + $0x10] sm:$0xff]
        %v768 = vld [vmem:[%s6 + $0x18] sm:$0xff]
        %769 = vset.pattern.permute.xlu0 3
        %770 = vperm.xlu0 %769, %v406
        %v771 = vpop.permute.xlu0 %770
        %773 = vset.pattern.permute.xlu0 3
        %774 = vperm.xlu0 %773, %v407
        %v775 = vpop.permute.xlu0 %774
        %777 = vset.pattern.permute.xlu0 3
        %778 = vperm.xlu0 %777, %v408
        %v779 = vpop.permute.xlu0 %778
        %781 = vset.pattern.permute.xlu0 3
        %782 = vperm.xlu0 %781, %v409
        %v783 = vpop.permute.xlu0 %782
        %vm785 = vcmask 785408
        %v787 = vsel %vm785, %v765, 0
        %v790 = vsel %vm785, %v766, 0
        %v793 = vsel %vm785, %v767, 0
        %v796 = vsel %vm785, %v768, 0
        %798 = vmatpush.msra.mxu0 0.0
        %799 = vmatpush.msra.mxu0 0.0
        %800 = vmatpush.msra.mxu0 0.0
        %801 = vmatpush.msra.mxu0 0.0
        %802 = vmatpush.msra.mxu0 %v760
        %803 = vmatpush.msra.mxu0 %v759
        %804 = vmatpush.msra.mxu0 %v758
        %805 = vmatpush.msra.mxu0 %v757
        %806 = vmatpush.msra.mxu0 %v736
        %807 = vmatpush.msra.mxu0 %v735
        %808 = vmatpush.msra.mxu0 %v734
        %809 = vmatpush.msra.mxu0 %v733
        %810 = vmatpush.msra.mxu0 %v707
        %811 = vmatpush.msra.mxu0 %v705
        %812 = vmatpush.msra.mxu0 %v703
        %813 = vmatpush.msra.mxu0 %v701
        %814 = vmatmul.f32.gmra.mxu0 %v787
        %v815 = vpop.f32.mrf.mxu0
        %v816 = vadd.f32 %v771, %v815
        %817 = vmatmul.f32.gmra.mxu0 %v790
        %v818 = vpop.f32.mrf.mxu0
        %v819 = vadd.f32 %v775, %v818
        %820 = vmatmul.f32.gmra.mxu0 %v793
        %v821 = vpop.f32.mrf.mxu0
        %v822 = vadd.f32 %v779, %v821
        %823 = vmatmul.f32.gmra.mxu0 %v796
        %v824 = vpop.f32.mrf.mxu0
        %v825 = vadd.f32 %v783, %v824
        %826 = vdwg.mxu0
        %v827 = vmax.f32 %v816, 0.0
        %v828 = vmax.f32 %v819, 0.0
        %v829 = vmax.f32 %v822, 0.0
        %v830 = vmax.f32 %v825, 0.0
        %v831 = vadd.f32 %v827, %v828
        %v832 = vadd.f32 %v831, %v829
        %v833 = vadd.f32 %v832, %v830
        %v834 = vrot.slane %v833, 4
        %v835 = vadd.f32 %v833, %v834
        %v836 = vrot.slane %v835, 2
        %v837 = vadd.f32 %v835, %v836
        %v838 = vrot.slane %v837, 1
        %v839 = vadd.f32 %v837, %v838
        %v840 = vmul.f32 %v839, %v571
        %v841 = vsub.f32 %v827, %v840
        %v842 = vsub.f32 %v828, %v840
        %v843 = vsub.f32 %v829, %v840
        %v844 = vsub.f32 %v830, %v840
        %v845 = vmul.f32 %v841, %v841
        %v846 = vmul.f32 %v842, %v842
        %v847 = vmul.f32 %v843, %v843
        %v848 = vmul.f32 %v844, %v844
        %v849 = vadd.f32 %v845, %v846
        %v850 = vadd.f32 %v849, %v847
        %v851 = vadd.f32 %v850, %v848
        %v852 = vrot.slane %v851, 4
        %v853 = vadd.f32 %v851, %v852
        %v854 = vrot.slane %v853, 2
        %v855 = vadd.f32 %v853, %v854
        %v856 = vrot.slane %v855, 1
        %v857 = vadd.f32 %v855, %v856
        %v858 = vmul.f32 %v857, %v571
        %v859 = vadd.f32 %v858, 1e-05
        %v860 = vrsqrt.pop %v859
        %v861 = vmul.f32 %v860, %v859
        %v862 = vmul.f32 %v861, %v860
        %v863 = vmul.f32 0.5, %v862
        %v864 = vsub.f32 1.5, %v863
        %v865 = vmul.f32 %v860, %v864
        %vm866 = vweird.f32 %v859
        %vm867 = vweird.f32 %v860
        %vm868 = vmor %vm866, %vm867
        %v869 = vsel %vm868, %v860, %v865
        %v870 = vmul.f32 %v841, %v869
        %v871 = vmul.f32 %v842, %v869
        %v872 = vmul.f32 %v843, %v869
        %v873 = vmul.f32 %v844, %v869
        %874 = vset.pattern.permute.xlu0 4
        %875 = vperm.xlu0 %874, %v406
        %v876 = vpop.permute.xlu0 %875
        %878 = vset.pattern.permute.xlu0 4
        %879 = vperm.xlu0 %878, %v407
        %v880 = vpop.permute.xlu0 %879
        %882 = vset.pattern.permute.xlu0 4
        %883 = vperm.xlu0 %882, %v408
        %v884 = vpop.permute.xlu0 %883
        %886 = vset.pattern.permute.xlu0 4
        %887 = vperm.xlu0 %886, %v409
        %v888 = vpop.permute.xlu0 %887
        %v890 = vmul.f32 %v870, %v876
        %v891 = vmul.f32 %v871, %v880
        %v892 = vmul.f32 %v872, %v884
        %v893 = vmul.f32 %v873, %v888
        %894 = vset.pattern.permute.xlu0 5
        %895 = vperm.xlu0 %894, %v406
        %v896 = vpop.permute.xlu0 %895
        %898 = vset.pattern.permute.xlu0 5
        %899 = vperm.xlu0 %898, %v407
        %v900 = vpop.permute.xlu0 %899
        %902 = vset.pattern.permute.xlu0 5
        %903 = vperm.xlu0 %902, %v408
        %v904 = vpop.permute.xlu0 %903
        %906 = vset.pattern.permute.xlu0 5
        %907 = vperm.xlu0 %906, %v409
        %v908 = vpop.permute.xlu0 %907
        %v910 = vadd.f32 %v890, %v896
        %v911 = vadd.f32 %v891, %v900
        %v912 = vadd.f32 %v892, %v904
        %v913 = vadd.f32 %v893, %v908
        %914 = vset.pattern.permute.xlu0 6
        %915 = vperm.xlu0 %914, %v406
        %v916 = vpop.permute.xlu0 %915
        %918 = vset.pattern.permute.xlu0 6
        %919 = vperm.xlu0 %918, %v407
        %v920 = vpop.permute.xlu0 %919
        %922 = vset.pattern.permute.xlu0 6
        %923 = vperm.xlu0 %922, %v408
        %v924 = vpop.permute.xlu0 %923
        %926 = vset.pattern.permute.xlu0 6
        %927 = vperm.xlu0 %926, %v409
        %v928 = vpop.permute.xlu0 %927
        %v930 = vmul.f32 %v916, %v910
        %v931 = vmul.f32 %v920, %v911
        %v932 = vmul.f32 %v924, %v912
        %v933 = vmul.f32 %v928, %v913
        %v934 = vadd.f32 %v930, %v931
        %v935 = vadd.f32 %v934, %v932
        %v936 = vadd.f32 %v935, %v933
        %v937 = vrot.slane %v936, 4
        %v938 = vadd.f32 %v936, %v937
        %v939 = vrot.slane %v938, 2
        %v940 = vadd.f32 %v938, %v939
        %v941 = vrot.slane %v940, 1
        %v942 = vadd.f32 %v940, %v941
        %943 = vset.pattern.permute.xlu0 7
        %944 = vperm.xlu0 %943, %v406
        %v945 = vpop.permute.xlu0 %944
        %v947 = vadd.f32 %v942, %v945
        %950 = vrot.lane.b32.xlu0 %v404, 126
        %v951 = vpop.permute.xlu0 %950
        %952 = vrot.lane.b32.xlu0 %v405, 126
        %v953 = vpop.permute.xlu0 %952
        %v954 = vsel %vm430, %v951, %v953
        %v956 = vmul.f32 %v947, %v954
        %957 = vst [vmem:[%s367] sm:$0x1] %v956
        %s958 = sand.u32 %s222, 1
        %s959 = scalar_lea.sflag [#allocation3], %s958
        %s960 = sand.u32 %s222, 1
        %s961 = scalar_lea.vmem [#allocation2], %s960
        // Predicated region
        $region49: #{tpu_custom_call.1} parent=47 // pred_check
          %p962 = pneg %p232
        $region50: #{tpu_custom_call.1} parent=47 // pred_check_branch
          %964 = sbr.rel (%p962) target = $region52
        $region51: #{tpu_custom_call.1} parent=47 // pred_region
          %966 = vsyncadd %s959, 0
          %s967 = sadd.s32 %s26, %s25
          %s968 = scalar_lea.hbm %s7, %s967
          %s970 = sshll.u32 %s961, 4
          %s971 = int_to_ptr.vmem [resolvable:$true] %s970
          %s972 = sshll.u32 %s968, 4
          %s973 = int_to_ptr.hbm [resolvable:$true] %s972
          %975 = dma.vmem_to_hbm [thread:$0]  %s971, 16, %s973, %s959
        $region52: #{tpu_custom_call.1} parent=47 // pred_fallthru
          _
      $region48: #{tpu_custom_call.1} parent=5 // pred_fallthru
        _
      %p976 = scmp.le.s32.totalorder 2, %s16
      // Predicated region
      $region53: #{tpu_custom_call.1} parent=5 // pred_check
        %p977 = pneg %p976
      $region54: #{tpu_custom_call.1} parent=5 // pred_check_branch
        %979 = sbr.rel (%p977) target = $region56
      $region55: #{tpu_custom_call.1} parent=5 // pred_region
        %s980 = ssub.s32 %s16, 2
        // Predicated region
        $region57: #{tpu_custom_call.1} parent=55 // pred_check
          %p981 = pneg %p238
        $region58: #{tpu_custom_call.1} parent=55 // pred_check_branch
          %983 = sbr.rel (%p981) target = $region60
        $region59: #{tpu_custom_call.1} parent=55 // pred_region
          %s984 = sand.u32 %s223, 1
          %s985 = scalar_lea.sflag [#allocation3], %s984
          %s986 = sand.u32 %s223, 1
          %s987 = scalar_lea.vmem [#allocation2], %s986
          %989 = dma.done %s985, 16
        $region60: #{tpu_custom_call.1} parent=55 // pred_fallthru
          _
      $region56: #{tpu_custom_call.1} parent=5 // pred_fallthru
        _
    $region6: #{tpu_custom_call.1} parent=1 // loop_footer
      %s20 = sadd.s32 1, %s16
    $region7: #{tpu_custom_call.1} parent=1 // loop_footer_branch
      %15 = sbr.rel target = $region3
    $region8: #{tpu_custom_call.1} parent=1 // loop_exit
      _
    %990 = vsyncpa [#allocation3], 1
    %s991 = scalar_lea.sflag [#allocation3], 1
    %992 = vsyncpa %s991, 1

</llo_original>
